<compile_context>
chip_gen: v7x
topology: tpu7x:2x2x1
jax: 0.10.0
libtpu: 0.0.40
codegen_flags: <defaults>
</compile_context>

<pallas_src>
import functools

import jax
import jax.numpy as jnp
import numpy as np
from jax.experimental import pallas as pl
from jax.experimental.pallas import tpu as pltpu


def _tpu_device_kind():
    try:
        return jax.devices()[0].device_kind.lower()
    except Exception:
        return ""


# ---------------------------------------------------------------------------
# Pallas kernel: fused  logits -> LSE -> exp(logsigmoid(beta*Δ)/λ)
#                       -> masked row-reduced per-modality accumulation
# ---------------------------------------------------------------------------
def _cavpref_fused_kernel(h_ref, w_ref, out_ref, acc_ref, *,
                          betas, lams, n_valid, tile_rows, rows_per_split,
                          mask_rows, tail_bf16):
    p = pl.program_id(0)          # parallel axis (v7x megacore; serial on 1-TC)
    i = pl.program_id(1)          # arbitrary axis (row tiles within a split)
    nb = pl.num_programs(1)
    n_terms = len(betas)
    n_slabs = n_terms + 1
    hdim = h_ref.shape[-1]

    @pl.when(i == 0)
    def _():
        acc_ref[...] = jnp.zeros_like(acc_ref)

    base = p * rows_per_split + i * tile_rows

    def compute():
        # ONE MXU matmul: winning + all losing row slabs streamed against the
        # resident W (bf16 in, f32 accumulate).
        lhs = h_ref[...].reshape(n_slabs * tile_rows, hdim)
        logits = jnp.dot(lhs, w_ref[...], preferred_element_type=jnp.float32)

        # Per-row LSE scalars only — no full log_softmax slab stays live.
        mx = jnp.max(logits, axis=-1, keepdims=True)
        lse = mx + jnp.log(jnp.sum(jnp.exp(logits - mx), axis=-1,
                                   keepdims=True))

        logits_w = logits[:tile_rows]
        lse_w = lse[:tile_rows]

        if mask_rows:
            # Row-validity mask (only traced when padding exists); shared by
            # all modality terms.
            row_ids = base + jax.lax.broadcasted_iota(jnp.int32,
                                                      (tile_rows, 1), 0)
            rowmask = row_ids < n_valid

        for t in range(n_terms):                 # static unroll over terms
            lo = (1 + t) * tile_rows
            d = ((logits_w - logits[lo:lo + tile_rows])
                 - (lse_w - lse[lo:lo + tile_rows]))
            x = betas[t] * d
            if lams[t] == 1.0:
                # exp(logsigmoid(x)/1) == sigmoid(x) == 0.5*(1 + tanh(x/2)):
                # a single EUP op (no exp + reciprocal, no overflow).
                if tail_bf16:                    # bf16 VPU/EUP on v6e/v7x
                    x = x.astype(jnp.bfloat16)
                vals = 0.5 * (jnp.tanh(0.5 * x) + 1.0)
            else:
                logsig = jnp.minimum(x, 0.0) - jnp.log1p(jnp.exp(-jnp.abs(x)))
                vals = jnp.exp(logsig * (1.0 / lams[t]))
            if mask_rows:
                vals = jnp.where(rowmask, vals, 0.0)
            # Free XLU row-reduce: accumulator RMW is (1, vocab) per term
            # instead of (tile_rows, vocab).
            acc_ref[t] += jnp.sum(vals.astype(jnp.float32), axis=0,
                                  keepdims=True)

    if mask_rows:
        # Skip tiles that are entirely padding (dead MXU/EUP work).
        pl.when(base < n_valid)(compute)
    else:
        compute()

    @pl.when(i == nb - 1)
    def _():
        out_ref[0] = acc_ref[...]                # lane-dense (vocab) store


def cavpref_pref_sums(h_win, losing_list, w_out, betas, lams, *,
                      max_tile_rows=256, num_parallel=None,
                      vmem_limit_bytes=None):
    """For each modality term m, returns
         sum_{tokens, vocab} exp(logsigmoid(beta_m * (log_softmax(h_win @ W)
                                 - log_softmax(h_lose_m @ W))) / lam_m)
       with a single fused pallas_call."""
    n, hdim = h_win.shape
    n_terms = len(losing_list)
    n_slabs = n_terms + 1
    vocab = w_out.shape[1]

    kind = _tpu_device_kind()
    if num_parallel is None:
        # Only v7x has two TensorCores/chip; on v5e/v6e an extra split is just
        # a serial loop plus extra padded work.
        num_parallel = 2 if "v7" in kind else 1
    # bf16 VPU/EUP exist on v6e/v7x; keep the elementwise tail f32 on v5e.
    tail_bf16 = ("v6" in kind) or ("v7" in kind)

    row_align = 16  # bf16 (16, 128) sublane tiling minimum
    num_parallel = max(1, min(num_parallel, pl.cdiv(n, row_align)))
    rows_per_split = pl.cdiv(n, num_parallel)
    rows_per_split = pl.cdiv(rows_per_split, row_align) * row_align
    tile_rows = min(max_tile_rows, rows_per_split)
    rows_per_split = pl.cdiv(rows_per_split, tile_rows) * tile_rows
    blocks_per_split = rows_per_split // tile_rows
    n_pad = rows_per_split * num_parallel
    pad = n_pad - n

    # Cast to bf16 BEFORE padding/stacking (halves the HBM copy traffic) and
    # build one (1 + n_terms, N_pad, H) slab so each tile needs one matmul.
    slabs = [h_win.astype(jnp.bfloat16)] \
        + [h.astype(jnp.bfloat16) for h in losing_list]
    h_all = jnp.stack(slabs, axis=0)
    h_all = jnp.pad(h_all, ((0, 0), (0, pad), (0, 0)))
    w = w_out.astype(jnp.bfloat16)

    # TODO(synk): betas/lams are baked in as compile-time constants; if they
    # vary step-to-step they should instead be passed via SMEM scalar prefetch
    # (keeping only the lam==1 fast-path specialization static).
    kernel = functools.partial(
        _cavpref_fused_kernel,
        betas=tuple(float(b) for b in betas),
        lams=tuple(float(l) for l in lams),
        n_valid=n, tile_rows=tile_rows, rows_per_split=rows_per_split,
        mask_rows=(pad > 0), tail_bf16=tail_bf16)

    cp_kwargs = dict(dimension_semantics=("parallel", "arbitrary"))
    if vmem_limit_bytes is not None:
        # Caller-provided only; never default to the full physical VMEM.
        cp_kwargs["vmem_limit_bytes"] = int(vmem_limit_bytes)

    # TODO(synk): at real LLM vocab sizes (32k-128k) the vocab axis must be
    # tiled with an online log-softmax; vocab=128 here so the full-vocab block
    # plus the (n_terms, 1, vocab) accumulator is tiny.
    out = pl.pallas_call(
        kernel,
        out_shape=jax.ShapeDtypeStruct((num_parallel, n_terms, 1, vocab),
                                       jnp.float32),
        grid_spec=pltpu.PrefetchScalarGridSpec(
            num_scalar_prefetch=0,
            grid=(num_parallel, blocks_per_split),
            in_specs=[
                pl.BlockSpec((n_slabs, tile_rows, hdim),
                             lambda p, i: (0, p * blocks_per_split + i, 0)),
                pl.BlockSpec((hdim, vocab), lambda p, i: (0, 0)),
            ],
            out_specs=pl.BlockSpec((1, n_terms, 1, vocab),
                                   lambda p, i: (p, 0, 0, 0)),
            scratch_shapes=[pltpu.VMEM((n_terms, 1, vocab), jnp.float32)],
        ),
        compiler_params=pltpu.CompilerParams(**cp_kwargs),
    )(h_all, w)

    # Tiny collapse over parallel splits + vocab lanes in plain XLA.
    return jnp.sum(out, axis=(0, 2, 3))          # (n_terms,)


# ---------------------------------------------------------------------------
# CAVPref (JAX / Pallas version)
# ---------------------------------------------------------------------------
class CAVPrefPallas:
    def __init__(self, d_text=16, d_vis=16, d_aud=16, hidden=32, vocab=128,
                 lambdas=None):
        self.lambdas = lambdas or {'T': 1.0, 'V': 1.0, 'A': 0.8}
        self.eta = {'MCIT': 0, 'ICIT': 0, 'MVIT': 1, 'MAIT': 0,
                    'COT-Stitch': 0, 'COT-Swap': 1, 'CAT': 0, 'MVT': 1,
                    'MAT': 0}
        self.gamma = {'MCIT': 0, 'ICIT': 0, 'MVIT': 0, 'MAIT': 1,
                      'COT-Stitch': 0, 'COT-Swap': 1, 'CAT': 0, 'MVT': 0,
                      'MAT': 1}
        self.hidden = hidden
        self.vocab = vocab

        # Deterministic synthetic "avllm" parameters.
        k = jax.random.PRNGKey(42)
        k1, k2, k3, k4 = jax.random.split(k, 4)
        self.Wt = jax.random.normal(k1, (d_text, hidden), jnp.float32) * 0.1
        self.Wv = jax.random.normal(k2, (d_vis, hidden), jnp.float32) * 0.1
        self.Wa = jax.random.normal(k3, (d_aud, hidden), jnp.float32) * 0.1
        self.Wout = jax.random.normal(k4, (hidden, vocab), jnp.float32) * 0.1

    # Synthetic avllm hidden states (glue, plain JAX).
    # TODO(synk): the real avllm forward / tokenizer has no Pallas equivalent;
    # it is replaced by deterministic linear projections of the same structure.
    def _hidden(self, text, visual, audio):
        # text: [B, S, Dt]; visual: [B, Fv, Dv]; audio: [B, Fa, Da]
        h = (text @ self.Wt
             + (visual.mean(axis=1) @ self.Wv)[:, None, :]
             + (audio.mean(axis=1) @ self.Wa)[:, None, :])
        return h  # [B, S, H]

    def _logprob_rows(self, text, visual, audio):
        # Mirrors return_log_probs: logits[:, :-1, :] then log_softmax(-1).
        # (labels / loss_mask in the reference are dead code and unused.)
        h = self._hidden(text, visual, audio)[:, :-1, :]        # [B, S-1, H]
        return h.reshape(-1, self.hidden)                       # [N, H]

    def forward(self, T, V, A, betas=None, task_name='MCIT'):
        betas = betas or {'T': 0.1, 'V': 0.1, 'A': 0.1}

        # winning_{text,visual,audio}_logprobs in the reference are all
        # computed from the all-winning inputs -> compute the hidden rows once.
        h_win = self._logprob_rows(T['winning'], V['winning'], A['winning'])

        losing = [self._logprob_rows(T['losing'], V['winning'], A['winning'])]
        t_betas = [betas['T']]
        t_lams = [self.lambdas['T']]
        t_weights = [1.0]
        if self.eta[task_name] != 0:
            losing.append(self._logprob_rows(T['winning'], V['losing'],
                                             A['winning']))
            t_betas.append(betas['V'])
            t_lams.append(self.lambdas['V'])
            t_weights.append(float(self.eta[task_name]))
        if self.gamma[task_name] != 0:
            losing.append(self._logprob_rows(T['winning'], V['winning'],
                                             A['losing']))
            t_betas.append(betas['A'])
            t_lams.append(self.lambdas['A'])
            t_weights.append(float(self.gamma[task_name]))

        sums = cavpref_pref_sums(h_win, losing, self.Wout, t_betas, t_lams)
        n_elems = h_win.shape[0] * self.vocab
        loss = jnp.float32(0.0)
        for m in range(len(t_betas)):
            loss = loss + t_weights[m] * (
                -t_lams[m] * jnp.log(sums[m] / n_elems))
        return loss

    # Pure-JAX f32 reference of the whole forward (for verification only).
    def forward_ref(self, T, V, A, betas=None, task_name='MCIT'):
        betas = betas or {'T': 0.1, 'V': 0.1, 'A': 0.1}

        def logprobs(text, visual, audio):
            h = self._hidden(text, visual, audio)[:, :-1, :]
            logits = h @ self.Wout
            return jax.nn.log_softmax(logits, axis=-1)

        def term(lp_w, lp_l, beta, lam):
            x = beta * (lp_w - lp_l)
            logsig = jnp.minimum(x, 0.0) - jnp.log1p(jnp.exp(-jnp.abs(x)))
            return -lam * jnp.log(jnp.mean(jnp.exp(logsig / lam)))

        lp_win = logprobs(T['winning'], V['winning'], A['winning'])
        loss = term(lp_win,
                    logprobs(T['losing'], V['winning'], A['winning']),
                    betas['T'], self.lambdas['T'])
        if self.eta[task_name] != 0:
            loss = loss + self.eta[task_name] * term(
                lp_win, logprobs(T['winning'], V['losing'], A['winning']),
                betas['V'], self.lambdas['V'])
        if self.gamma[task_name] != 0:
            loss = loss + self.gamma[task_name] * term(
                lp_win, logprobs(T['winning'], V['winning'], A['losing']),
                betas['A'], self.lambdas['A'])
        return loss


if __name__ == "__main__":
    B, S = 2, 8
    Dt, Fv, Dv, Fa, Da = 16, 4, 16, 6, 16

    key = jax.random.PRNGKey(0)
    ks = jax.random.split(key, 6)
    T = {'winning': jax.random.normal(ks[0], (B, S, Dt), jnp.float32),
         'losing':  jax.random.normal(ks[1], (B, S, Dt), jnp.float32)}
    V = {'winning': jax.random.normal(ks[2], (B, Fv, Dv), jnp.float32),
         'losing':  jax.random.normal(ks[3], (B, Fv, Dv), jnp.float32)}
    A = {'winning': jax.random.normal(ks[4], (B, Fa, Da), jnp.float32),
         'losing':  jax.random.normal(ks[5], (B, Fa, Da), jnp.float32)}

    model = CAVPrefPallas(d_text=Dt, d_vis=Dv, d_aud=Da, hidden=32, vocab=128)

    # 'COT-Swap' exercises all three preference terms (text + visual + audio).
    loss = model.forward(T, V, A, task_name='COT-Swap')
    loss = jax.block_until_ready(loss)

    loss_ref = model.forward_ref(T, V, A, task_name='COT-Swap')
    # Tolerance covers bf16 MXU inputs + (on v6e/v7x) the bf16 elementwise
    # tail of the sigmoid fast path.
    np.testing.assert_allclose(np.asarray(loss), np.asarray(loss_ref),
                               rtol=2e-2, atol=2e-2)

    print("KERNEL_OK")
</pallas_src>

<mosaic_0001>
module attributes {stable_mosaic.version = 11 : i64} {
  func.func @_cavpref_fused_kernel(%arg0: i32, %arg1: i32, %arg2: memref<4x16x32xbf16, #tpu.memory_space<vmem>>, %arg3: memref<32x128xbf16, #tpu.memory_space<vmem>>, %arg4: memref<1x3x1x128xf32, #tpu.memory_space<vmem>>, %arg5: memref<3x1x128xf32, #tpu.memory_space<vmem>>) attributes {dimension_semantics = [#tpu.dimension_semantics<parallel>, #tpu.dimension_semantics<arbitrary>], iteration_bounds = array<i64: 1, 1>, scalar_prefetch = 0 : i64, scratch_operands = 1 : i64, tpu.core_type = #tpu.core_type<tc>, window_params = [{transform_indices = @transform_0, window_bounds = array<i64: 4, 16, 32>}, {pipeline_mode = #tpu.pipeline_mode<synchronous>, transform_indices = @transform_1, window_bounds = array<i64: 32, 128>}, {transform_indices = @transform_2, window_bounds = array<i64: 1, 3, 1, 128>}]} {
    %c0_i32 = arith.constant 0 : i32
    %0 = arith.cmpi eq, %arg1, %c0_i32 : i32
    %1 = arith.extui %0 : i1 to i32
    %c0_i32_0 = arith.constant 0 : i32
    %2 = arith.cmpi ne, %1, %c0_i32_0 : i32
    scf.if %2 {
      %cst = arith.constant 0.000000e+00 : f32
      %12 = vector.broadcast %cst : f32 to vector<3x1x128xf32>
      %c0 = arith.constant 0 : index
      %c0_5 = arith.constant 0 : index
      %c0_6 = arith.constant 0 : index
      %13 = vector.load %arg5[%c0, %c0_5, %c0_6] : memref<3x1x128xf32, #tpu.memory_space<vmem>>, vector<3x1x128xf32>
      tpu.vector_store %arg5[%c0, %c0_5, %c0_6], %12 {strides = array<i32>} : memref<3x1x128xf32, #tpu.memory_space<vmem>>, vector<3x1x128xf32>,
    } else {
    }
    %c16_i32 = arith.constant 16 : i32
    %3 = arith.muli %arg0, %c16_i32 : i32
    %c16_i32_1 = arith.constant 16 : i32
    %4 = arith.muli %arg1, %c16_i32_1 : i32
    %5 = arith.addi %3, %4 : i32
    %c14_i32 = arith.constant 14 : i32
    %6 = arith.cmpi slt, %5, %c14_i32 : i32
    %7 = arith.extui %6 : i1 to i32
    %c0_i32_2 = arith.constant 0 : i32
    %8 = arith.cmpi ne, %7, %c0_i32_2 : i32
    scf.if %8 {
      %c0 = arith.constant 0 : index
      %c0_5 = arith.constant 0 : index
      %c0_6 = arith.constant 0 : index
      %12 = vector.load %arg2[%c0, %c0_5, %c0_6] : memref<4x16x32xbf16, #tpu.memory_space<vmem>>, vector<4x16x32xbf16>
      %13 = vector.shape_cast %12 : vector<4x16x32xbf16> to vector<64x32xbf16>
      %c0_7 = arith.constant 0 : index
      %c0_8 = arith.constant 0 : index
      %14 = vector.load %arg3[%c0_7, %c0_8] : memref<32x128xbf16, #tpu.memory_space<vmem>>, vector<32x128xbf16>
      %cst = arith.constant dense<0.000000e+00> : vector<64x128xf32>
      %15 = tpu.matmul %13, %14, %cst {dimension_numbers = #tpu.dot_dimension_numbers<[1], [0], [0], [1], [0, 0, 1, 1], [], []>} : vector<64x32xbf16>, vector<32x128xbf16>, vector<64x128xf32> -> vector<64x128xf32>
      %cst_9 = arith.constant dense<0xFF800000> : vector<64xf32>
      %16 = vector.multi_reduction <maximumf>, %15, %cst_9 [1] : vector<64x128xf32> to vector<64xf32>
      %17 = vector.shape_cast %16 : vector<64xf32> to vector<64x1xf32>
      %18 = vector.broadcast %17 : vector<64x1xf32> to vector<64x128xf32>
      %19 = arith.subf %15, %18 : vector<64x128xf32>
      %20 = math.exp %19 : vector<64x128xf32>
      %cst_10 = arith.constant dense<0.000000e+00> : vector<64xf32>
      %21 = vector.multi_reduction <add>, %20, %cst_10 [1] : vector<64x128xf32> to vector<64xf32>
      %22 = vector.shape_cast %21 : vector<64xf32> to vector<64x1xf32>
      %23 = math.log %22 : vector<64x1xf32>
      %24 = arith.addf %17, %23 : vector<64x1xf32>
      %25 = vector.extract_strided_slice %15 {offsets = [0, 0], sizes = [16, 128], strides = [1, 1]} : vector<64x128xf32> to vector<16x128xf32>
      %26 = vector.extract_strided_slice %24 {offsets = [0, 0], sizes = [16, 1], strides = [1, 1]} : vector<64x1xf32> to vector<16x1xf32>
      %27 = tpu.iota {dimensions = array<i32: 0>} : vector<16x1xi32>
      %28 = vector.broadcast %5 : i32 to vector<16x1xi32>
      %29 = arith.addi %28, %27 : vector<16x1xi32>
      %c14_i32_11 = arith.constant 14 : i32
      %30 = vector.broadcast %c14_i32_11 : i32 to vector<16x1xi32>
      %31 = arith.cmpi slt, %29, %30 : vector<16x1xi32>
      %32 = vector.extract_strided_slice %15 {offsets = [16, 0], sizes = [16, 128], strides = [1, 1]} : vector<64x128xf32> to vector<16x128xf32>
      %33 = arith.subf %25, %32 : vector<16x128xf32>
      %34 = vector.extract_strided_slice %24 {offsets = [16, 0], sizes = [16, 1], strides = [1, 1]} : vector<64x1xf32> to vector<16x1xf32>
      %35 = arith.subf %26, %34 : vector<16x1xf32>
      %36 = vector.broadcast %35 : vector<16x1xf32> to vector<16x128xf32>
      %37 = arith.subf %33, %36 : vector<16x128xf32>
      %cst_12 = arith.constant 1.000000e-01 : f32
      %38 = vector.broadcast %cst_12 : f32 to vector<16x128xf32>
      %39 = arith.mulf %38, %37 : vector<16x128xf32>
      %cst_13 = arith.constant 5.000000e-01 : f32
      %40 = vector.broadcast %cst_13 : f32 to vector<16x128xf32>
      %41 = arith.mulf %40, %39 : vector<16x128xf32>
      %42 = math.tanh %41 : vector<16x128xf32>
      %cst_14 = arith.constant 1.000000e+00 : f32
      %43 = vector.broadcast %cst_14 : f32 to vector<16x128xf32>
      %44 = arith.addf %42, %43 : vector<16x128xf32>
      %cst_15 = arith.constant 5.000000e-01 : f32
      %45 = vector.broadcast %cst_15 : f32 to vector<16x128xf32>
      %46 = arith.mulf %45, %44 : vector<16x128xf32>
      %cst_16 = arith.constant 0.000000e+00 : f32
      %47 = vector.shape_cast %31 : vector<16x1xi1> to vector<16x1xi1>
      %48 = vector.broadcast %47 : vector<16x1xi1> to vector<16x128xi1>
      %49 = vector.broadcast %cst_16 : f32 to vector<16x128xf32>
      %50 = arith.select %48, %46, %49 : vector<16x128xi1>, vector<16x128xf32>
      %c0_17 = arith.constant 0 : index
      %c0_18 = arith.constant 0 : index
      %c0_19 = arith.constant 0 : index
      %51 = vector.load %arg5[%c0_17, %c0_18, %c0_19] : memref<3x1x128xf32, #tpu.memory_space<vmem>>, vector<1x1x128xf32>
      %52 = vector.shape_cast %51 : vector<1x1x128xf32> to vector<1x128xf32>
      %cst_20 = arith.constant dense<0.000000e+00> : vector<128xf32>
      %53 = vector.multi_reduction <add>, %50, %cst_20 [0] : vector<16x128xf32> to vector<128xf32>
      %54 = vector.shape_cast %53 : vector<128xf32> to vector<1x128xf32>
      %55 = arith.addf %52, %54 : vector<1x128xf32>
      %c0_21 = arith.constant 0 : index
      %c0_22 = arith.constant 0 : index
      %c0_23 = arith.constant 0 : index
      %56 = vector.load %arg5[%c0_21, %c0_22, %c0_23] : memref<3x1x128xf32, #tpu.memory_space<vmem>>, vector<1x1x128xf32>
      %57 = vector.shape_cast %56 : vector<1x1x128xf32> to vector<1x128xf32>
      %58 = vector.shape_cast %55 : vector<1x128xf32> to vector<1x1x128xf32>
      tpu.vector_store %arg5[%c0_21, %c0_22, %c0_23], %58 {strides = array<i32>} : memref<3x1x128xf32, #tpu.memory_space<vmem>>, vector<1x1x128xf32>,
      %59 = vector.extract_strided_slice %15 {offsets = [32, 0], sizes = [16, 128], strides = [1, 1]} : vector<64x128xf32> to vector<16x128xf32>
      %60 = arith.subf %25, %59 : vector<16x128xf32>
      %61 = vector.extract_strided_slice %24 {offsets = [32, 0], sizes = [16, 1], strides = [1, 1]} : vector<64x1xf32> to vector<16x1xf32>
      %62 = arith.subf %26, %61 : vector<16x1xf32>
      %63 = vector.broadcast %62 : vector<16x1xf32> to vector<16x128xf32>
      %64 = arith.subf %60, %63 : vector<16x128xf32>
      %cst_24 = arith.constant 1.000000e-01 : f32
      %65 = vector.broadcast %cst_24 : f32 to vector<16x128xf32>
      %66 = arith.mulf %65, %64 : vector<16x128xf32>
      %cst_25 = arith.constant 5.000000e-01 : f32
      %67 = vector.broadcast %cst_25 : f32 to vector<16x128xf32>
      %68 = arith.mulf %67, %66 : vector<16x128xf32>
      %69 = math.tanh %68 : vector<16x128xf32>
      %cst_26 = arith.constant 1.000000e+00 : f32
      %70 = vector.broadcast %cst_26 : f32 to vector<16x128xf32>
      %71 = arith.addf %69, %70 : vector<16x128xf32>
      %cst_27 = arith.constant 5.000000e-01 : f32
      %72 = vector.broadcast %cst_27 : f32 to vector<16x128xf32>
      %73 = arith.mulf %72, %71 : vector<16x128xf32>
      %cst_28 = arith.constant 0.000000e+00 : f32
      %74 = vector.shape_cast %31 : vector<16x1xi1> to vector<16x1xi1>
      %75 = vector.broadcast %74 : vector<16x1xi1> to vector<16x128xi1>
      %76 = vector.broadcast %cst_28 : f32 to vector<16x128xf32>
      %77 = arith.select %75, %73, %76 : vector<16x128xi1>, vector<16x128xf32>
      %c1 = arith.constant 1 : index
      %c0_29 = arith.constant 0 : index
      %c0_30 = arith.constant 0 : index
      %78 = vector.load %arg5[%c1, %c0_29, %c0_30] : memref<3x1x128xf32, #tpu.memory_space<vmem>>, vector<1x1x128xf32>
      %79 = vector.shape_cast %78 : vector<1x1x128xf32> to vector<1x128xf32>
      %cst_31 = arith.constant dense<0.000000e+00> : vector<128xf32>
      %80 = vector.multi_reduction <add>, %77, %cst_31 [0] : vector<16x128xf32> to vector<128xf32>
      %81 = vector.shape_cast %80 : vector<128xf32> to vector<1x128xf32>
      %82 = arith.addf %79, %81 : vector<1x128xf32>
      %c1_32 = arith.constant 1 : index
      %c0_33 = arith.constant 0 : index
      %c0_34 = arith.constant 0 : index
      %83 = vector.load %arg5[%c1_32, %c0_33, %c0_34] : memref<3x1x128xf32, #tpu.memory_space<vmem>>, vector<1x1x128xf32>
      %84 = vector.shape_cast %83 : vector<1x1x128xf32> to vector<1x128xf32>
      %85 = vector.shape_cast %82 : vector<1x128xf32> to vector<1x1x128xf32>
      tpu.vector_store %arg5[%c1_32, %c0_33, %c0_34], %85 {strides = array<i32>} : memref<3x1x128xf32, #tpu.memory_space<vmem>>, vector<1x1x128xf32>,
      %86 = vector.extract_strided_slice %15 {offsets = [48, 0], sizes = [16, 128], strides = [1, 1]} : vector<64x128xf32> to vector<16x128xf32>
      %87 = arith.subf %25, %86 : vector<16x128xf32>
      %88 = vector.extract_strided_slice %24 {offsets = [48, 0], sizes = [16, 1], strides = [1, 1]} : vector<64x1xf32> to vector<16x1xf32>
      %89 = arith.subf %26, %88 : vector<16x1xf32>
      %90 = vector.broadcast %89 : vector<16x1xf32> to vector<16x128xf32>
      %91 = arith.subf %87, %90 : vector<16x128xf32>
      %cst_35 = arith.constant 1.000000e-01 : f32
      %92 = vector.broadcast %cst_35 : f32 to vector<16x128xf32>
      %93 = arith.mulf %92, %91 : vector<16x128xf32>
      %cst_36 = arith.constant 0.000000e+00 : f32
      %94 = vector.broadcast %cst_36 : f32 to vector<16x128xf32>
      %95 = arith.minimumf %93, %94 : vector<16x128xf32>
      %96 = math.absf %93 : vector<16x128xf32>
      %cst_37 = arith.constant 0.000000e+00 : f32
      %97 = vector.broadcast %cst_37 : f32 to vector<16x128xf32>
      %98 = arith.subf %97, %96 : vector<16x128xf32>
      %99 = math.exp %98 : vector<16x128xf32>
      %100 = math.log1p %99 : vector<16x128xf32>
      %101 = arith.subf %95, %100 : vector<16x128xf32>
      %cst_38 = arith.constant 1.250000e+00 : f32
      %102 = vector.broadcast %cst_38 : f32 to vector<16x128xf32>
      %103 = arith.mulf %101, %102 : vector<16x128xf32>
      %104 = math.exp %103 : vector<16x128xf32>
      %cst_39 = arith.constant 0.000000e+00 : f32
      %105 = vector.shape_cast %31 : vector<16x1xi1> to vector<16x1xi1>
      %106 = vector.broadcast %105 : vector<16x1xi1> to vector<16x128xi1>
      %107 = vector.broadcast %cst_39 : f32 to vector<16x128xf32>
      %108 = arith.select %106, %104, %107 : vector<16x128xi1>, vector<16x128xf32>
      %c2 = arith.constant 2 : index
      %c0_40 = arith.constant 0 : index
      %c0_41 = arith.constant 0 : index
      %109 = vector.load %arg5[%c2, %c0_40, %c0_41] : memref<3x1x128xf32, #tpu.memory_space<vmem>>, vector<1x1x128xf32>
      %110 = vector.shape_cast %109 : vector<1x1x128xf32> to vector<1x128xf32>
      %cst_42 = arith.constant dense<0.000000e+00> : vector<128xf32>
      %111 = vector.multi_reduction <add>, %108, %cst_42 [0] : vector<16x128xf32> to vector<128xf32>
      %112 = vector.shape_cast %111 : vector<128xf32> to vector<1x128xf32>
      %113 = arith.addf %110, %112 : vector<1x128xf32>
      %c2_43 = arith.constant 2 : index
      %c0_44 = arith.constant 0 : index
      %c0_45 = arith.constant 0 : index
      %114 = vector.load %arg5[%c2_43, %c0_44, %c0_45] : memref<3x1x128xf32, #tpu.memory_space<vmem>>, vector<1x1x128xf32>
      %115 = vector.shape_cast %114 : vector<1x1x128xf32> to vector<1x128xf32>
      %116 = vector.shape_cast %113 : vector<1x128xf32> to vector<1x1x128xf32>
      tpu.vector_store %arg5[%c2_43, %c0_44, %c0_45], %116 {strides = array<i32>} : memref<3x1x128xf32, #tpu.memory_space<vmem>>, vector<1x1x128xf32>,
    } else {
    }
    %c0_i32_3 = arith.constant 0 : i32
    %9 = arith.cmpi eq, %arg1, %c0_i32_3 : i32
    %10 = arith.extui %9 : i1 to i32
    %c0_i32_4 = arith.constant 0 : i32
    %11 = arith.cmpi ne, %10, %c0_i32_4 : i32
    scf.if %11 {
      %c0 = arith.constant 0 : index
      %c0_5 = arith.constant 0 : index
      %c0_6 = arith.constant 0 : index
      %12 = vector.load %arg5[%c0, %c0_5, %c0_6] : memref<3x1x128xf32, #tpu.memory_space<vmem>>, vector<3x1x128xf32>
      %c0_7 = arith.constant 0 : index
      %c0_8 = arith.constant 0 : index
      %c0_9 = arith.constant 0 : index
      %c0_10 = arith.constant 0 : index
      %13 = vector.load %arg4[%c0_7, %c0_8, %c0_9, %c0_10] : memref<1x3x1x128xf32, #tpu.memory_space<vmem>>, vector<1x3x1x128xf32>
      %14 = vector.shape_cast %13 : vector<1x3x1x128xf32> to vector<3x1x128xf32>
      %15 = vector.shape_cast %12 : vector<3x1x128xf32> to vector<1x3x1x128xf32>
      tpu.vector_store %arg4[%c0_7, %c0_8, %c0_9, %c0_10], %15 {strides = array<i32>} : memref<1x3x1x128xf32, #tpu.memory_space<vmem>>, vector<1x3x1x128xf32>,
    } else {
    }
    return
  }
  func.func @transform_0(%arg0: i32, %arg1: i32) -> (i32, i32, i32) {
    %c1_i32 = arith.constant 1 : i32
    %0 = arith.muli %arg0, %c1_i32 : i32
    %1 = arith.addi %0, %arg1 : i32
    %c0_i32 = arith.constant 0 : i32
    %c0_i32_0 = arith.constant 0 : i32
    %c0_i32_1 = arith.constant 0 : i32
    return %c0_i32, %1, %c0_i32_0 : i32, i32, i32
  }
  func.func @transform_1(%arg0: i32, %arg1: i32) -> (i32, i32) {
    %c0_i32 = arith.constant 0 : i32
    %c0_i32_0 = arith.constant 0 : i32
    %c0_i32_1 = arith.constant 0 : i32
    return %c0_i32, %c0_i32_0 : i32, i32
  }
  func.func @transform_2(%arg0: i32, %arg1: i32) -> (i32, i32, i32, i32) {
    %c0_i32 = arith.constant 0 : i32
    %c0_i32_0 = arith.constant 0 : i32
    %c0_i32_1 = arith.constant 0 : i32
    %c0_i32_2 = arith.constant 0 : i32
    return %arg0, %c0_i32, %c0_i32_0, %c0_i32_1 : i32, i32, i32, i32
  }
}

</mosaic_0001>

<llo_original>
// kernel: tpu_custom_call.1
$region0: #{tpu_custom_call.1}
  #allocation0 [shape = 'u32[]', space=smem, size = 0x4, offset = 0x4, fixed_abs, tag = 'smem constant byte address 0x4 - core index']
  #allocation1 [shape = 'u32[144,128]{1,0:T(1,128)}', space=vmem, size = 0x12000, scoped, tag = 'internal scratch']
  #allocation2 [shape = 'f32[3,1,128]{2,1,0:T(1,128)}', space=vmem, size = 0x600, scoped, tag = 'scratch operand']
  %s0 = inlined_call_operand.hbm [shape: bf16[4,16,32], index: 0, kind: input, shape index: {}]
  %s1 = inlined_call_operand.hbm [shape: bf16[32,128], index: 1, kind: input, shape index: {}]
  %s2 = inlined_call_operand.hbm [shape: f32[1,3,1,128], index: 2, kind: output, shape index: {}]
  %s3 = sld [smem:[#allocation0]]
  $region38: #{tpu_custom_call.1} parent=0
    _
  %s5 = ssub.s32 1, %s3
  %s6 = scalar_select 0, %s5, %s3
  $region1: #{tpu_custom_call.1} parent=0
    #allocation3 [shape = 'u8[16384]{0}', space=vmem, size = 0x4000, scoped, tag = 'input window, operand 0, single buffered']
    #allocation4 [shape = 's32[1]{0}', space=sflag, size = 0x4, scoped, tag = 'scoped memory for tpu_custom_call.1']
    #allocation5 [shape = 's32[1]{0}', space=sflag, size = 0x4, scoped, tag = 'scoped memory for tpu_custom_call.1']
    #allocation6 [shape = 'u8[8192]{0}', space=vmem, size = 0x2000, scoped, tag = 'input window, operand 1, single buffered']
    #allocation7 [shape = 's32[1]{0}', space=sflag, size = 0x4, scoped, tag = 'scoped memory for tpu_custom_call.1']
    #allocation8 [shape = 'u8[1536]{0}', space=vmem, size = 0x800, scoped, tag = 'output window, operand 0, single buffered']
    %7 = vsyncpa [#allocation4], 0
    %8 = vsyncpa [#allocation7], 0
    %9 = vsyncpa [#allocation5], 0
    // Predicated region
    $region2: #{tpu_custom_call.1} parent=1 // pred_check
      _
    $region3: #{tpu_custom_call.1} parent=1 // pred_check_branch
      %11 = sbr.rel (0) target = $region5
    $region4: #{tpu_custom_call.1} parent=1 // pred_region
      %s12 = sadd.s32 0, 0
      %s13 = smul.u32 2, %s12
      %s15 = ssub.s32 512, 512
      %16 = vsyncadd [#allocation4], %s15
      %s17 = smul.addr %s13, 64
      %s18 = scalar_lea.hbm %s0, %s17
      %s19 = sshll.u32 [#allocation3], 4
      %s20 = int_to_ptr.vmem [resolvable:$true] %s19
      %25 = dma.hbm_to_vmem [thread:$0]  %s18, 512, %s20, [#allocation4], 64, 64, 4
    $region5: #{tpu_custom_call.1} parent=1 // pred_fallthru
      _
    // Predicated region
    $region6: #{tpu_custom_call.1} parent=1 // pred_check
      _
    $region7: #{tpu_custom_call.1} parent=1 // pred_check_branch
      %27 = sbr.rel (0) target = $region9
    $region8: #{tpu_custom_call.1} parent=1 // pred_region
      %s29 = ssub.s32 256, 256
      %30 = vsyncadd [#allocation7], %s29
      %s31 = sshll.u32 [#allocation6], 4
      %s32 = int_to_ptr.vmem [resolvable:$true] %s31
      %37 = dma.hbm_to_vmem [thread:$0]  %s1, 256, %s32, [#allocation7], 64, 64, 4
    $region9: #{tpu_custom_call.1} parent=1 // pred_fallthru
      _
    // Predicated region
    $region10: #{tpu_custom_call.1} parent=1 // pred_check
      _
    $region11: #{tpu_custom_call.1} parent=1 // pred_check_branch
      %39 = sbr.rel (0) target = $region13
    $region12: #{tpu_custom_call.1} parent=1 // pred_region
      %40 = dma.done [#allocation4], 512
    $region13: #{tpu_custom_call.1} parent=1 // pred_fallthru
      _
    // Predicated region
    $region14: #{tpu_custom_call.1} parent=1 // pred_check
      _
    $region15: #{tpu_custom_call.1} parent=1 // pred_check_branch
      %42 = sbr.rel (0) target = $region17
    $region16: #{tpu_custom_call.1} parent=1 // pred_region
      %43 = dma.done [#allocation7], 256
    $region17: #{tpu_custom_call.1} parent=1 // pred_fallthru
      _
    %s44 = sadd.s32 0, 0
    %s45 = smul.u32 2, %s44
    %p47 = scmp.eq.s32.totalorder 0, 0
    // Predicated region
    $region18: #{tpu_custom_call.1} parent=1 // pred_check
      %p48 = pneg %p47
    $region19: #{tpu_custom_call.1} parent=1 // pred_check_branch
      %50 = sbr.rel (%p48) target = $region21
    $region20: #{tpu_custom_call.1} parent=1 // pred_region
      %51 = vst [vmem:[#allocation2] sm:$0x1] 0.0
      %52 = vst [vmem:[#allocation2 + $0x1] sm:$0x1] 0.0
      %53 = vst [vmem:[#allocation2 + $0x2] sm:$0x1] 0.0
    $region21: #{tpu_custom_call.1} parent=1 // pred_fallthru
      _
    %s54 = smul.u32 0, 16
    %s55 = smul.u32 0, 16
    %s56 = sadd.s32 %s54, %s55
    %p57 = scmp.lt.s32.totalorder %s56, 14
    // Predicated region
    $region22: #{tpu_custom_call.1} parent=1 // pred_check
      %p58 = pneg %p57
    $region23: #{tpu_custom_call.1} parent=1 // pred_check_branch
      %60 = sbr.rel (%p58) target = $region25
    $region24: #{tpu_custom_call.1} parent=1 // pred_region
      %v61 = vld [vmem:[#allocation3] sm:$0xf]
      %v62 = vld [vmem:[#allocation3 + $0x4] sm:$0xf]
      %v63 = vld [vmem:[#allocation3 + $0x8] sm:$0xf]
      %v64 = vld [vmem:[#allocation3 + $0xc] sm:$0xf]
      %v65 = vld [vmem:[#allocation3 + $0x10] sm:$0xf]
      %v66 = vld [vmem:[#allocation3 + $0x14] sm:$0xf]
      %v67 = vld [vmem:[#allocation3 + $0x18] sm:$0xf]
      %v68 = vld [vmem:[#allocation3 + $0x1c] sm:$0xf]
      %v69 = vld [vmem:[#allocation6] sm:$0xf]
      %v70 = vld [vmem:[#allocation6 + $0x4] sm:$0xf]
      %v71 = vld [vmem:[#allocation6 + $0x8] sm:$0xf]
      %v72 = vld [vmem:[#allocation6 + $0xc] sm:$0xf]
      %v81 = vunpack.c.l.b16 %v61
      %v82 = vunpack.c.l.b16 %v62
      %v83 = vunpack.c.l.b16 %v63
      %v84 = vunpack.c.l.b16 %v64
      %v85 = vunpack.c.l.b16 %v65
      %v86 = vunpack.c.l.b16 %v66
      %v87 = vunpack.c.l.b16 %v67
      %v88 = vunpack.c.l.b16 %v68
      %v89 = vpack.c.b16 %v82, %v81
      %v90 = vpack.c.b16 %v84, %v83
      %v91 = vpack.c.b16 %v86, %v85
      %v92 = vpack.c.b16 %v88, %v87
      %v97 = vunpack.c.l.b16 %v69
      %v98 = vunpack.c.l.b16 %v70
      %v99 = vunpack.c.l.b16 %v71
      %v100 = vunpack.c.l.b16 %v72
      %v101 = vpack.c.b16 %v98, %v97
      %v102 = vpack.c.b16 %v100, %v99
      %vm105 = vcmask 261120
      %v107 = vsel %vm105, %v89, 0
      %v110 = vsel %vm105, %v90, 0
      %v113 = vsel %vm105, %v91, 0
      %v116 = vsel %vm105, %v92, 0
      %118 = vmatprep.subr.bf16.mxu0 0
      %119 = vmatpush1.bf16.msra.mxu0 %v101
      %120 = vmatprep.subr.bf16.mxu0 0
      %121 = vmatpush1.bf16.msra.mxu0 %v102
      %122 = vmatprep.subr.bf16.mxu0 0
      %123 = vmatpush1.bf16.msra.mxu0 0
      %124 = vmatprep.subr.bf16.mxu0 0
      %125 = vmatpush1.bf16.msra.mxu0 0
      %126 = vmatprep.subr.bf16.mxu0 0
      %127 = vmatpush1.bf16.msra.mxu0 0
      %128 = vmatprep.subr.bf16.mxu0 0
      %129 = vmatpush1.bf16.msra.mxu0 0
      %130 = vmatprep.subr.bf16.mxu0 0
      %131 = vmatpush1.bf16.msra.mxu0 0
      %132 = vmatprep.subr.bf16.mxu0 0
      %133 = vmatpush1.bf16.msra.mxu0 0
      %134 = vmatprep.subr.bf16.mxu0 0
      %135 = vmatpush1.bf16.msra.mxu0 0
      %136 = vmatprep.subr.bf16.mxu0 0
      %137 = vmatpush1.bf16.msra.mxu0 0
      %138 = vmatprep.subr.bf16.mxu0 0
      %139 = vmatpush1.bf16.msra.mxu0 0
      %140 = vmatprep.subr.bf16.mxu0 0
      %141 = vmatpush1.bf16.msra.mxu0 0
      %142 = vmatprep.subr.bf16.mxu0 0
      %143 = vmatpush1.bf16.msra.mxu0 0
      %144 = vmatprep.subr.bf16.mxu0 0
      %145 = vmatpush1.bf16.msra.mxu0 0
      %146 = vmatprep.subr.bf16.mxu0 0
      %147 = vmatpush1.bf16.msra.mxu0 0
      %148 = vmatprep.subr.bf16.mxu0 0
      %149 = vmatpush1.bf16.msra.mxu0 0
      %150 = vmatprep.mubr.bf16.mxu0 0
      %151 = vmatmul.mubr.bf16.gmra.mrb[0].mxu0 %v107
      %v152 = vpop.f32.mrb[0].mxu0
      %v153 = vadd.f32 0.0, %v152
      %v154 = vpop.f32.mrb[0].mxu0
      %v155 = vpop.f32.mrb[0].mxu0
      %v156 = vadd.f32 0.0, %v155
      %v157 = vpop.f32.mrb[0].mxu0
      %158 = vmatprep.mubr.bf16.mxu0 0
      %159 = vmatmul.mubr.bf16.gmra.mrb[0].mxu0 %v110
      %v160 = vpop.f32.mrb[0].mxu0
      %v161 = vadd.f32 0.0, %v160
      %v162 = vpop.f32.mrb[0].mxu0
      %v163 = vpop.f32.mrb[0].mxu0
      %v164 = vadd.f32 0.0, %v163
      %v165 = vpop.f32.mrb[0].mxu0
      %166 = vmatprep.mubr.bf16.mxu0 0
      %167 = vmatmul.mubr.bf16.gmra.mrb[0].mxu0 %v113
      %v168 = vpop.f32.mrb[0].mxu0
      %v169 = vadd.f32 0.0, %v168
      %v170 = vpop.f32.mrb[0].mxu0
      %v171 = vpop.f32.mrb[0].mxu0
      %v172 = vadd.f32 0.0, %v171
      %v173 = vpop.f32.mrb[0].mxu0
      %174 = vmatprep.mubr.bf16.mxu0 0
      %175 = vmatmul.mubr.bf16.gmra.mrb[0].mxu0 %v116
      %v176 = vpop.f32.mrb[0].mxu0
      %v177 = vadd.f32 0.0, %v176
      %v178 = vpop.f32.mrb[0].mxu0
      %v179 = vpop.f32.mrb[0].mxu0
      %v180 = vadd.f32 0.0, %v179
      %v181 = vpop.f32.mrb[0].mxu0
      %182 = vdwg.mxu0
      %183 = vmax.xlane.f32.xlu0 %v153
      %v184 = vpop.xlane.xlu0 %183
      %185 = vmax.xlane.f32.xlu0 %v156
      %v186 = vpop.xlane.xlu0 %185
      %187 = vmax.xlane.f32.xlu0 %v161
      %v188 = vpop.xlane.xlu0 %187
      %189 = vmax.xlane.f32.xlu0 %v164
      %v190 = vpop.xlane.xlu0 %189
      %191 = vmax.xlane.f32.xlu0 %v169
      %v192 = vpop.xlane.xlu0 %191
      %193 = vmax.xlane.f32.xlu0 %v172
      %v194 = vpop.xlane.xlu0 %193
      %195 = vmax.xlane.f32.xlu0 %v177
      %v196 = vpop.xlane.xlu0 %195
      %197 = vmax.xlane.f32.xlu0 %v180
      %v198 = vpop.xlane.xlu0 %197
      %v199 = vsub.f32 %v153, %v184
      %v200 = vsub.f32 %v156, %v186
      %v201 = vsub.f32 %v161, %v188
      %v202 = vsub.f32 %v164, %v190
      %v203 = vsub.f32 %v169, %v192
      %v204 = vsub.f32 %v172, %v194
      %v205 = vsub.f32 %v177, %v196
      %v206 = vsub.f32 %v180, %v198
      %v207 = vmul.f32 %v199, 1.442695
      %v208 = vpow.pop %v207
      %v209 = vmul.f32 %v200, 1.442695
      %v210 = vpow.pop %v209
      %v211 = vmul.f32 %v201, 1.442695
      %v212 = vpow.pop %v211
      %v213 = vmul.f32 %v202, 1.442695
      %v214 = vpow.pop %v213
      %v215 = vmul.f32 %v203, 1.442695
      %v216 = vpow.pop %v215
      %v217 = vmul.f32 %v204, 1.442695
      %v218 = vpow.pop %v217
      %v219 = vmul.f32 %v205, 1.442695
      %v220 = vpow.pop %v219
      %v221 = vmul.f32 %v206, 1.442695
      %v222 = vpow.pop %v221
      %223 = vadd.xlane.f32.xlu0 %v208
      %v224 = vpop.xlane.xlu0 %223
      %225 = vadd.xlane.f32.xlu0 %v210
      %v226 = vpop.xlane.xlu0 %225
      %227 = vadd.xlane.f32.xlu0 %v212
      %v228 = vpop.xlane.xlu0 %227
      %229 = vadd.xlane.f32.xlu0 %v214
      %v230 = vpop.xlane.xlu0 %229
      %231 = vadd.xlane.f32.xlu0 %v216
      %v232 = vpop.xlane.xlu0 %231
      %233 = vadd.xlane.f32.xlu0 %v218
      %v234 = vpop.xlane.xlu0 %233
      %235 = vadd.xlane.f32.xlu0 %v220
      %v236 = vpop.xlane.xlu0 %235
      %237 = vadd.xlane.f32.xlu0 %v222
      %v238 = vpop.xlane.xlu0 %237
      %v239 = vlog2.pop %v224
      %v240 = vmul.f32 %v239, 0.6931472
      %v241 = vlog2.pop %v226
      %v242 = vmul.f32 %v241, 0.6931472
      %v243 = vlog2.pop %v228
      %v244 = vmul.f32 %v243, 0.6931472
      %v245 = vlog2.pop %v230
      %v246 = vmul.f32 %v245, 0.6931472
      %v247 = vlog2.pop %v232
      %v248 = vmul.f32 %v247, 0.6931472
      %v249 = vlog2.pop %v234
      %v250 = vmul.f32 %v249, 0.6931472
      %v251 = vlog2.pop %v236
      %v252 = vmul.f32 %v251, 0.6931472
      %v253 = vlog2.pop %v238
      %v254 = vmul.f32 %v253, 0.6931472
      %v255 = vadd.f32 %v184, %v240
      %v256 = vadd.f32 %v186, %v242
      %v257 = vadd.f32 %v188, %v244
      %v258 = vadd.f32 %v190, %v246
      %v259 = vadd.f32 %v192, %v248
      %v260 = vadd.f32 %v194, %v250
      %v261 = vadd.f32 %v196, %v252
      %v262 = vadd.f32 %v198, %v254
      %v263 = vlaneseq
      %v264 = vshrl.u32 %v263, 7
      %v265 = vadd.s32 %v264, 8
      %v266 = vstv %s56
      %v267 = vadd.s32 %v266, %v264
      %v268 = vadd.s32 %v266, %v265
      %vm269 = vcmp.lt.s32.totalorder %v267, 14
      %vm270 = vcmp.lt.s32.totalorder %v268, 14
      %v271 = vsub.f32 %v153, %v161
      %v272 = vsub.f32 %v156, %v164
      %v273 = vsub.f32 %v255, %v257
      %v274 = vsub.f32 %v256, %v258
      %v275 = vsub.f32 %v271, %v273
      %v276 = vsub.f32 %v272, %v274
      %v277 = vmul.f32 %v275, 0.1
      %v278 = vmul.f32 %v276, 0.1
      %v279 = vmul.f32 %v277, 0.5
      %v280 = vmul.f32 %v278, 0.5
      %v281 = vtanh.pop %v279
      %v282 = vtanh.pop %v280
      %v283 = vadd.f32 %v281, 1.0
      %v284 = vadd.f32 %v282, 1.0
      %v285 = vmul.f32 %v283, 0.5
      %v286 = vmul.f32 %v284, 0.5
      %v287 = vsel %vm269, 1, 0
      %v288 = vsel %vm270, 1, 0
      %vm289 = vcmp.eq.s32.totalorder %v287, 1
      %vm290 = vcmp.eq.s32.totalorder %v288, 1
      %v291 = vsel %vm289, %v285, 0.0
      %v292 = vsel %vm290, %v286, 0.0
      %v293 = vld [vmem:[#allocation2] sm:$0x1]
      %v294 = vadd.f32 %v291, %v292
      %v295 = vrot.slane %v294, 4
      %v296 = vadd.f32 %v294, %v295
      %v297 = vrot.slane %v296, 2
      %v298 = vadd.f32 %v296, %v297
      %v299 = vrot.slane %v298, 1
      %v300 = vadd.f32 %v298, %v299
      %v301 = vadd.f32 %v293, %v300
      %302 = vst [vmem:[#allocation2] sm:$0x1] %v301
      %v303 = vsub.f32 %v153, %v169
      %v304 = vsub.f32 %v156, %v172
      %v305 = vsub.f32 %v255, %v259
      %v306 = vsub.f32 %v256, %v260
      %v307 = vsub.f32 %v303, %v305
      %v308 = vsub.f32 %v304, %v306
      %v309 = vmul.f32 %v307, 0.1
      %v310 = vmul.f32 %v308, 0.1
      %v311 = vmul.f32 %v309, 0.5
      %v312 = vmul.f32 %v310, 0.5
      %v313 = vtanh.pop %v311
      %v314 = vtanh.pop %v312
      %v315 = vadd.f32 %v313, 1.0
      %v316 = vadd.f32 %v314, 1.0
      %v317 = vmul.f32 %v315, 0.5
      %v318 = vmul.f32 %v316, 0.5
      %v319 = vsel %vm289, %v317, 0.0
      %v320 = vsel %vm290, %v318, 0.0
      %s321 = scalar_lea.vmem [#allocation2], 1
      %v322 = vld [vmem:[%s321] sm:$0x1]
      %v323 = vadd.f32 %v319, %v320
      %v324 = vrot.slane %v323, 4
      %v325 = vadd.f32 %v323, %v324
      %v326 = vrot.slane %v325, 2
      %v327 = vadd.f32 %v325, %v326
      %v328 = vrot.slane %v327, 1
      %v329 = vadd.f32 %v327, %v328
      %v330 = vadd.f32 %v322, %v329
      %331 = vst [vmem:[%s321] sm:$0x1] %v330
      %v332 = vsub.f32 %v153, %v177
      %v333 = vsub.f32 %v156, %v180
      %v334 = vsub.f32 %v255, %v261
      %v335 = vsub.f32 %v256, %v262
      %v336 = vsub.f32 %v332, %v334
      %v337 = vsub.f32 %v333, %v335
      %v338 = vmul.f32 %v336, 0.1
      %v339 = vmul.f32 %v337, 0.1
      %v340 = vmin.f32 %v338, 0.0
      %v341 = vmin.f32 %v339, 0.0
      %v342 = vand.u32 2147483647, %v338
      %v343 = vand.u32 2147483647, %v339
      %v344 = vsub.f32 0.0, %v342
      %v345 = vsub.f32 0.0, %v343
      %v346 = vmul.f32 %v344, 1.442695
      %v347 = vpow.pop %v346
      %v348 = vmul.f32 %v345, 1.442695
      %v349 = vpow.pop %v348
      %v350 = vadd.f32 %v347, 1.0
      %v351 = vlog2.pop %v350
      %v352 = vmul.f32 %v351, 0.6931472
      %v353 = vmul.f32 -0.5, %v347
      %v354 = vadd.f32 %v353, 1.0
      %v355 = vmul.f32 %v354, %v347
      %v356 = vand.u32 2147483647, %v347
      %vm357 = vcmp.lt.f32.partialorder %v356, 0.0004427343
      %v358 = vsel %vm357, %v355, %v352
      %v359 = vadd.f32 %v349, 1.0
      %v360 = vlog2.pop %v359
      %v361 = vmul.f32 %v360, 0.6931472
      %v362 = vmul.f32 -0.5, %v349
      %v363 = vadd.f32 %v362, 1.0
      %v364 = vmul.f32 %v363, %v349
      %v365 = vand.u32 2147483647, %v349
      %vm366 = vcmp.lt.f32.partialorder %v365, 0.0004427343
      %v367 = vsel %vm366, %v364, %v361
      %v368 = vsub.f32 %v340, %v358
      %v369 = vsub.f32 %v341, %v367
      %v370 = vmul.f32 %v368, 1.25
      %v371 = vmul.f32 %v369, 1.25
      %v372 = vmul.f32 %v370, 1.442695
      %v373 = vpow.pop %v372
      %v374 = vmul.f32 %v371, 1.442695
      %v375 = vpow.pop %v374
      %v376 = vsel %vm289, %v373, 0.0
      %v377 = vsel %vm290, %v375, 0.0
      %s378 = scalar_lea.vmem [#allocation2], 2
      %v379 = vld [vmem:[%s378] sm:$0x1]
      %v380 = vadd.f32 %v376, %v377
      %v381 = vrot.slane %v380, 4
      %v382 = vadd.f32 %v380, %v381
      %v383 = vrot.slane %v382, 2
      %v384 = vadd.f32 %v382, %v383
      %v385 = vrot.slane %v384, 1
      %v386 = vadd.f32 %v384, %v385
      %v387 = vadd.f32 %v379, %v386
      %388 = vst [vmem:[%s378] sm:$0x1] %v387
    $region25: #{tpu_custom_call.1} parent=1 // pred_fallthru
      _
    // Predicated region
    $region26: #{tpu_custom_call.1} parent=1 // pred_check
      %p389 = pneg %p47
    $region27: #{tpu_custom_call.1} parent=1 // pred_check_branch
      %391 = sbr.rel (%p389) target = $region29
    $region28: #{tpu_custom_call.1} parent=1 // pred_region
      %v392 = vld [vmem:[#allocation2] sm:$0x1]
      %v393 = vld [vmem:[#allocation2 + $0x1] sm:$0x1]
      %v394 = vld [vmem:[#allocation2 + $0x2] sm:$0x1]
      %395 = vst [vmem:[#allocation8] sm:$0x1] %v392
      %396 = vst [vmem:[#allocation8 + $0x1] sm:$0x1] %v393
      %397 = vst [vmem:[#allocation8 + $0x2] sm:$0x1] %v394
    $region29: #{tpu_custom_call.1} parent=1 // pred_fallthru
      _
    // Predicated region
    $region30: #{tpu_custom_call.1} parent=1 // pred_check
      _
    $region31: #{tpu_custom_call.1} parent=1 // pred_check_branch
      %399 = sbr.rel (0) target = $region33
    $region32: #{tpu_custom_call.1} parent=1 // pred_region
      %s401 = ssub.s32 48, 48
      %402 = vsyncadd [#allocation5], %s401
      %s403 = sshll.u32 [#allocation8], 4
      %s404 = int_to_ptr.vmem [resolvable:$true] %s403
      %409 = dma.vmem_to_hbm [thread:$0]  %s404, 48, %s2, [#allocation5], 16, 16, 1
    $region33: #{tpu_custom_call.1} parent=1 // pred_fallthru
      _
    // Predicated region
    $region34: #{tpu_custom_call.1} parent=1 // pred_check
      _
    $region35: #{tpu_custom_call.1} parent=1 // pred_check_branch
      %411 = sbr.rel (0) target = $region37
    $region36: #{tpu_custom_call.1} parent=1 // pred_region
      %412 = dma.done [#allocation5], 48
    $region37: #{tpu_custom_call.1} parent=1 // pred_fallthru
      _
    %413 = vsyncpa [#allocation4], 1
    %414 = vsyncpa [#allocation7], 1
    %415 = vsyncpa [#allocation5], 1

</llo_original>
